<compile_context>
chip_gen: v7x
topology: tpu7x:2x2x1
jax: 0.10.0
libtpu: 0.0.40
codegen_flags: <defaults>
</compile_context>

<pallas_src>
import functools

import numpy as np
import jax
import jax.numpy as jnp
from jax import lax
from jax.experimental import pallas as pl
from jax.experimental.pallas import tpu as pltpu

SR = 30.0          # sampling rate of the module (sr=30)
NUM_FEATS = 10     # [max, range, var, std, fft_mean, PA, A2, PH, A1, PWHH]


def _feature_kernel(x_ref, cos_ref, sin_ref, out_ref, *, n, sr):
    x = x_ref[...]                                   # (TB, N) f32
    tb = x.shape[0]
    dx = 1.0 / sr
    inv_n = 1.0 / n

    # ---------------- simple statistics (VPU + lane reductions) ----------------
    mx = jnp.max(x, axis=-1, keepdims=True)                         # (TB, 1)
    mn = jnp.min(x, axis=-1, keepdims=True)
    mean = jnp.sum(x, axis=-1, keepdims=True) * inv_n
    d = x - mean
    var = jnp.sum(d * d, axis=-1, keepdims=True) * (1.0 / (n - 1))  # unbiased (torch default)
    std = jnp.sqrt(var)

    # ---------------- mean |FFT| via explicit DFT on the MXU -------------------
    re = jnp.dot(x, cos_ref[...], preferred_element_type=jnp.float32)   # (TB, N)
    im = jnp.dot(x, sin_ref[...], preferred_element_type=jnp.float32)
    mag = jnp.sqrt(re * re + im * im)
    fftm = jnp.sum(mag, axis=-1, keepdims=True) * inv_n

    # ---------------- peak / valley analysis on interior samples i = 1..N-2 ----
    xl = x[:, 0:n - 2]            # sig[i-1]
    xm = x[:, 1:n - 1]            # sig[i]
    xr = x[:, 2:n]                # sig[i+1]
    idx = (lax.broadcasted_iota(jnp.int32, (tb, n - 2), 1) + 1).astype(jnp.float32)

    peak = (xm > xl) & (xm > xr)
    vall = (xm < xl) & (xm < xr)

    big = jnp.float32(n)          # sentinel for "no index found" (min searches)
    neg = jnp.float32(-1.0)       # sentinel for max searches

    n_peaks = jnp.sum(jnp.where(peak, 1.0, 0.0), axis=-1, keepdims=True)
    n_vals = jnp.sum(jnp.where(vall, 1.0, 0.0), axis=-1, keepdims=True)

    p0 = jnp.min(jnp.where(peak, idx, big), axis=-1, keepdims=True)   # peaks[0]
    v0 = jnp.min(jnp.where(vall, idx, big), axis=-1, keepdims=True)   # vals[0]
    v1 = jnp.min(jnp.where(vall & (idx > v0), idx, big), axis=-1, keepdims=True)  # vals[1]
    vL = jnp.max(jnp.where(vall, idx, neg), axis=-1, keepdims=True)   # vals[-1]

    def gather(j):
        # sig value at per-row interior index j (j in [1, N-2]); 0 if j is a sentinel
        return jnp.sum(jnp.where(idx == j, xm, 0.0), axis=-1, keepdims=True)

    def trapz(a, b):
        # trapezoid integral of sig[a:b] (python-slice semantics), dx = 1/sr;
        # 0 for slices with fewer than 2 samples (matches torch.trapz)
        inside = (idx >= a) & (idx <= b - 1.0)
        s = jnp.sum(jnp.where(inside, xm, 0.0), axis=-1, keepdims=True)
        t = dx * (s - 0.5 * (gather(a) + gather(b - 1.0)))
        return jnp.where(b - a >= 2.0, t, 0.0)

    x_p0 = gather(p0)             # sig[peaks[0]]
    x_v0 = gather(v0)             # sig[vals[0]]

    PA = trapz(v0, vL)            # trapz(sig[vals[0]:vals[-1]])
    A2 = trapz(p0, v1)            # trapz(sig[peaks[0]:vals[1]])
    PH = x_p0 - x_v0
    A1 = trapz(v0, p0)            # trapz(sig[vals[0]:peaks[0]])
    hh = 0.5 * (PH + x_v0)

    # li: first i in [v0, p0) with sig[i] >= hh, default v0
    cand_l = (idx >= v0) & (idx < p0) & (xm >= hh)
    li = jnp.min(jnp.where(cand_l, idx, big), axis=-1, keepdims=True)
    li = jnp.where(li == big, v0, li)
    # ri: first i counting DOWN from p0 (exclusive of v0) with sig[i] >= hh, default p0
    cand_r = (idx > v0) & (idx <= p0) & (xm >= hh)
    ri = jnp.max(jnp.where(cand_r, idx, neg), axis=-1, keepdims=True)
    ri = jnp.where(ri == neg, p0, ri)
    PWHH = (ri - li) * dx

    valid = (n_peaks >= 1.0) & (n_vals >= 2.0)

    def gate(v):
        return jnp.where(valid, v, 0.0)

    feats = jnp.concatenate(
        [mx, mx - mn, var, std, fftm,
         gate(PA), gate(A2), gate(PH), gate(A1), gate(PWHH)],
        axis=-1)                                                    # (TB, 10)
    out_ref[...] = feats.astype(out_ref.dtype)


def feature_extractor(x, *, sr=SR, tb=8):
    """x: (B, N) f32 signals.  Returns (B, 10) f32 features.

    tb = batch rows per grid step (multiple of 8).  For production workloads
    raise tb (64-256) within the VMEM budget (v7x: 64 MiB) per the perf review.
    """
    x = jnp.asarray(x, jnp.float32)
    b, n = x.shape
    b_pad = ((b + tb - 1) // tb) * tb
    if b_pad != b:
        x = jnp.pad(x, ((0, b_pad - b), (0, 0)))

    # DFT basis (constants, built at trace time).
    k = np.arange(n)
    ang = 2.0 * np.pi * np.outer(k, k) / n
    cos_m = jnp.asarray(np.cos(ang), jnp.float32)
    sin_m = jnp.asarray(np.sin(ang), jnp.float32)

    kernel = functools.partial(_feature_kernel, n=n, sr=float(sr))
    out = pl.pallas_call(
        kernel,
        out_shape=jax.ShapeDtypeStruct((b_pad, NUM_FEATS), jnp.float32),
        grid=(b_pad // tb,),
        in_specs=[
            pl.BlockSpec((tb, n), lambda i: (i, 0)),     # batch tile of signals
            pl.BlockSpec((n, n), lambda i: (0, 0)),      # DFT cos matrix
            pl.BlockSpec((n, n), lambda i: (0, 0)),      # DFT sin matrix
        ],
        out_specs=pl.BlockSpec((tb, NUM_FEATS), lambda i: (i, 0)),
        compiler_params=pltpu.CompilerParams(
            dimension_semantics=("parallel",)),
    )(x, cos_m, sin_m)
    return out[:b]


def feature_extractor_ref(x, sr=SR):
    """Pure numpy reference mirroring the PyTorch forward literally."""
    x = np.asarray(x, np.float32)
    dx = 1.0 / sr

    def trapz(y):
        y = np.asarray(y, np.float64)
        if y.size < 2:
            return 0.0
        return float(((y[1:] + y[:-1]) * 0.5 * dx).sum())

    feats = []
    for s in x:
        mx, mn = float(s.max()), float(s.min())
        var = float(s.var(ddof=1))
        std = float(np.sqrt(var))
        fftm = float(np.abs(np.fft.fft(s)).mean())
        n = len(s)
        peaks = [i for i in range(1, n - 1) if s[i] > s[i - 1] and s[i] > s[i + 1]]
        vals = [i for i in range(1, n - 1) if s[i] < s[i - 1] and s[i] < s[i + 1]]
        if len(peaks) < 1 or len(vals) < 2:
            ippg = [0.0] * 5
        else:
            PA = trapz(s[vals[0]:vals[-1]])
            A2 = trapz(s[peaks[0]:vals[1]])
            PH = float(s[peaks[0]] - s[vals[0]])
            A1 = trapz(s[vals[0]:peaks[0]])
            hh = (PH + float(s[vals[0]])) / 2.0
            li = next((i for i in range(vals[0], peaks[0]) if s[i] >= hh), vals[0])
            ri = next((i for i in range(peaks[0], vals[0], -1) if s[i] >= hh), peaks[0])
            PWHH = (ri - li) / sr
            ippg = [PA, A2, PH, A1, PWHH]
        feats.append([mx, mx - mn, var, std, fftm] + ippg)
    return np.asarray(feats, np.float32)


if __name__ == "__main__":
    B, N = 16, 128

    key = jax.random.PRNGKey(0)
    t = jnp.arange(N, dtype=jnp.float32) / jnp.float32(SR)
    base = jnp.sin(2.0 * jnp.pi * 1.3 * t)                   # PPG-like oscillation
    noise = 0.25 * jax.random.normal(key, (B, N), dtype=jnp.float32)
    x = base[None, :] + noise
    # row 0: monotone ramp -> no interior peaks/valleys -> exercises the zero-ippg branch
    x = x.at[0].set(jnp.linspace(-1.0, 1.0, N, dtype=jnp.float32))

    feats = jax.jit(feature_extractor)(x)
    jax.block_until_ready(feats)
    assert feats.shape == (B, NUM_FEATS)

    ref = feature_extractor_ref(np.asarray(x), sr=SR)
    got = np.asarray(feats)
    # non-FFT features are pure VPU/XLU f32 math -> tight tolerance
    np.testing.assert_allclose(got[:, :4], ref[:, :4], rtol=1e-4, atol=1e-4)
    np.testing.assert_allclose(got[:, 5:], ref[:, 5:], rtol=1e-4, atol=1e-4)
    # mean |FFT| goes through the MXU (f32 multi-pass) -> slightly looser
    np.testing.assert_allclose(got[:, 4], ref[:, 4], rtol=1e-2, atol=1e-2)

    print("KERNEL_OK")
</pallas_src>

<mosaic_0001>
module attributes {stable_mosaic.version = 11 : i64} {
  func.func @_feature_kernel(%arg0: i32, %arg1: memref<8x128xf32, #tpu.memory_space<vmem>>, %arg2: memref<128x128xf32, #tpu.memory_space<vmem>>, %arg3: memref<128x128xf32, #tpu.memory_space<vmem>>, %arg4: memref<8x10xf32, #tpu.memory_space<vmem>>) attributes {dimension_semantics = [#tpu.dimension_semantics<parallel>], iteration_bounds = array<i64: 2>, scalar_prefetch = 0 : i64, scratch_operands = 0 : i64, tpu.core_type = #tpu.core_type<tc>, window_params = [{transform_indices = @transform_0, window_bounds = array<i64: 8, 128>}, {pipeline_mode = #tpu.pipeline_mode<synchronous>, transform_indices = @transform_1, window_bounds = array<i64: 128, 128>}, {pipeline_mode = #tpu.pipeline_mode<synchronous>, transform_indices = @transform_2, window_bounds = array<i64: 128, 128>}, {transform_indices = @transform_3, window_bounds = array<i64: 8, 10>}]} {
    %c0 = arith.constant 0 : index
    %c0_0 = arith.constant 0 : index
    %0 = vector.load %arg1[%c0, %c0_0] : memref<8x128xf32, #tpu.memory_space<vmem>>, vector<8x128xf32>
    %cst = arith.constant dense<0xFF800000> : vector<8xf32>
    %1 = vector.multi_reduction <maximumf>, %0, %cst [1] : vector<8x128xf32> to vector<8xf32>
    %2 = vector.shape_cast %1 : vector<8xf32> to vector<8x1xf32>
    %cst_1 = arith.constant dense<0x7F800000> : vector<8xf32>
    %3 = vector.multi_reduction <minimumf>, %0, %cst_1 [1] : vector<8x128xf32> to vector<8xf32>
    %4 = vector.shape_cast %3 : vector<8xf32> to vector<8x1xf32>
    %cst_2 = arith.constant dense<0.000000e+00> : vector<8xf32>
    %5 = vector.multi_reduction <add>, %0, %cst_2 [1] : vector<8x128xf32> to vector<8xf32>
    %6 = vector.shape_cast %5 : vector<8xf32> to vector<8x1xf32>
    %cst_3 = arith.constant 7.812500e-03 : f32
    %7 = vector.broadcast %cst_3 : f32 to vector<8x1xf32>
    %8 = arith.mulf %6, %7 : vector<8x1xf32>
    %9 = vector.broadcast %8 : vector<8x1xf32> to vector<8x128xf32>
    %10 = arith.subf %0, %9 : vector<8x128xf32>
    %11 = arith.mulf %10, %10 : vector<8x128xf32>
    %cst_4 = arith.constant dense<0.000000e+00> : vector<8xf32>
    %12 = vector.multi_reduction <add>, %11, %cst_4 [1] : vector<8x128xf32> to vector<8xf32>
    %13 = vector.shape_cast %12 : vector<8xf32> to vector<8x1xf32>
    %cst_5 = arith.constant 0.00787401571 : f32
    %14 = vector.broadcast %cst_5 : f32 to vector<8x1xf32>
    %15 = arith.mulf %13, %14 : vector<8x1xf32>
    %16 = math.sqrt %15 : vector<8x1xf32>
    %c0_6 = arith.constant 0 : index
    %c0_7 = arith.constant 0 : index
    %17 = vector.load %arg2[%c0_6, %c0_7] : memref<128x128xf32, #tpu.memory_space<vmem>>, vector<128x128xf32>
    %cst_8 = arith.constant dense<0.000000e+00> : vector<8x128xf32>
    %18 = tpu.matmul %0, %17, %cst_8 {dimension_numbers = #tpu.dot_dimension_numbers<[1], [0], [0], [1], [0, 0, 1, 1], [], []>} : vector<8x128xf32>, vector<128x128xf32>, vector<8x128xf32> -> vector<8x128xf32>
    %c0_9 = arith.constant 0 : index
    %c0_10 = arith.constant 0 : index
    %19 = vector.load %arg3[%c0_9, %c0_10] : memref<128x128xf32, #tpu.memory_space<vmem>>, vector<128x128xf32>
    %cst_11 = arith.constant dense<0.000000e+00> : vector<8x128xf32>
    %20 = tpu.matmul %0, %19, %cst_11 {dimension_numbers = #tpu.dot_dimension_numbers<[1], [0], [0], [1], [0, 0, 1, 1], [], []>} : vector<8x128xf32>, vector<128x128xf32>, vector<8x128xf32> -> vector<8x128xf32>
    %21 = arith.mulf %18, %18 : vector<8x128xf32>
    %22 = arith.mulf %20, %20 : vector<8x128xf32>
    %23 = arith.addf %21, %22 : vector<8x128xf32>
    %24 = math.sqrt %23 : vector<8x128xf32>
    %cst_12 = arith.constant dense<0.000000e+00> : vector<8xf32>
    %25 = vector.multi_reduction <add>, %24, %cst_12 [1] : vector<8x128xf32> to vector<8xf32>
    %26 = vector.shape_cast %25 : vector<8xf32> to vector<8x1xf32>
    %cst_13 = arith.constant 7.812500e-03 : f32
    %27 = vector.broadcast %cst_13 : f32 to vector<8x1xf32>
    %28 = arith.mulf %26, %27 : vector<8x1xf32>
    %29 = vector.extract_strided_slice %0 {offsets = [0, 0], sizes = [8, 126], strides = [1, 1]} : vector<8x128xf32> to vector<8x126xf32>
    %30 = vector.extract_strided_slice %0 {offsets = [0, 1], sizes = [8, 126], strides = [1, 1]} : vector<8x128xf32> to vector<8x126xf32>
    %31 = vector.extract_strided_slice %0 {offsets = [0, 2], sizes = [8, 126], strides = [1, 1]} : vector<8x128xf32> to vector<8x126xf32>
    %32 = tpu.iota {dimensions = array<i32: 1>} : vector<8x126xi32>
    %c1_i32 = arith.constant 1 : i32
    %33 = vector.broadcast %c1_i32 : i32 to vector<8x126xi32>
    %34 = arith.addi %32, %33 : vector<8x126xi32>
    %35 = arith.sitofp %34 : vector<8x126xi32> to vector<8x126xf32>
    %36 = arith.cmpf ogt, %30, %29 : vector<8x126xf32>
    %37 = arith.cmpf ogt, %30, %31 : vector<8x126xf32>
    %38 = arith.andi %36, %37 : vector<8x126xi1>
    %39 = arith.cmpf olt, %30, %29 : vector<8x126xf32>
    %40 = arith.cmpf olt, %30, %31 : vector<8x126xf32>
    %41 = arith.andi %39, %40 : vector<8x126xi1>
    %cst_14 = arith.constant 1.000000e+00 : f32
    %cst_15 = arith.constant 0.000000e+00 : f32
    %42 = vector.broadcast %cst_14 : f32 to vector<8x126xf32>
    %43 = vector.broadcast %cst_15 : f32 to vector<8x126xf32>
    %44 = arith.select %38, %42, %43 : vector<8x126xi1>, vector<8x126xf32>
    %cst_16 = arith.constant dense<0.000000e+00> : vector<8xf32>
    %45 = vector.multi_reduction <add>, %44, %cst_16 [1] : vector<8x126xf32> to vector<8xf32>
    %46 = vector.shape_cast %45 : vector<8xf32> to vector<8x1xf32>
    %cst_17 = arith.constant 1.000000e+00 : f32
    %cst_18 = arith.constant 0.000000e+00 : f32
    %47 = vector.broadcast %cst_17 : f32 to vector<8x126xf32>
    %48 = vector.broadcast %cst_18 : f32 to vector<8x126xf32>
    %49 = arith.select %41, %47, %48 : vector<8x126xi1>, vector<8x126xf32>
    %cst_19 = arith.constant dense<0.000000e+00> : vector<8xf32>
    %50 = vector.multi_reduction <add>, %49, %cst_19 [1] : vector<8x126xf32> to vector<8xf32>
    %51 = vector.shape_cast %50 : vector<8xf32> to vector<8x1xf32>
    %cst_20 = arith.constant 1.280000e+02 : f32
    %52 = vector.broadcast %cst_20 : f32 to vector<8x126xf32>
    %53 = arith.select %38, %35, %52 : vector<8x126xi1>, vector<8x126xf32>
    %cst_21 = arith.constant dense<0x7F800000> : vector<8xf32>
    %54 = vector.multi_reduction <minimumf>, %53, %cst_21 [1] : vector<8x126xf32> to vector<8xf32>
    %55 = vector.shape_cast %54 : vector<8xf32> to vector<8x1xf32>
    %cst_22 = arith.constant 1.280000e+02 : f32
    %56 = vector.broadcast %cst_22 : f32 to vector<8x126xf32>
    %57 = arith.select %41, %35, %56 : vector<8x126xi1>, vector<8x126xf32>
    %cst_23 = arith.constant dense<0x7F800000> : vector<8xf32>
    %58 = vector.multi_reduction <minimumf>, %57, %cst_23 [1] : vector<8x126xf32> to vector<8xf32>
    %59 = vector.shape_cast %58 : vector<8xf32> to vector<8x1xf32>
    %60 = vector.broadcast %59 : vector<8x1xf32> to vector<8x126xf32>
    %61 = arith.cmpf ogt, %35, %60 : vector<8x126xf32>
    %62 = arith.andi %41, %61 : vector<8x126xi1>
    %cst_24 = arith.constant 1.280000e+02 : f32
    %63 = vector.broadcast %cst_24 : f32 to vector<8x126xf32>
    %64 = arith.select %62, %35, %63 : vector<8x126xi1>, vector<8x126xf32>
    %cst_25 = arith.constant dense<0x7F800000> : vector<8xf32>
    %65 = vector.multi_reduction <minimumf>, %64, %cst_25 [1] : vector<8x126xf32> to vector<8xf32>
    %66 = vector.shape_cast %65 : vector<8xf32> to vector<8x1xf32>
    %cst_26 = arith.constant -1.000000e+00 : f32
    %67 = vector.broadcast %cst_26 : f32 to vector<8x126xf32>
    %68 = arith.select %41, %35, %67 : vector<8x126xi1>, vector<8x126xf32>
    %cst_27 = arith.constant dense<0xFF800000> : vector<8xf32>
    %69 = vector.multi_reduction <maximumf>, %68, %cst_27 [1] : vector<8x126xf32> to vector<8xf32>
    %70 = vector.shape_cast %69 : vector<8xf32> to vector<8x1xf32>
    %71 = vector.broadcast %55 : vector<8x1xf32> to vector<8x126xf32>
    %72 = arith.cmpf oeq, %35, %71 : vector<8x126xf32>
    %cst_28 = arith.constant 0.000000e+00 : f32
    %73 = vector.broadcast %cst_28 : f32 to vector<8x126xf32>
    %74 = arith.select %72, %30, %73 : vector<8x126xi1>, vector<8x126xf32>
    %cst_29 = arith.constant dense<0.000000e+00> : vector<8xf32>
    %75 = vector.multi_reduction <add>, %74, %cst_29 [1] : vector<8x126xf32> to vector<8xf32>
    %76 = vector.shape_cast %75 : vector<8xf32> to vector<8x1xf32>
    %77 = vector.broadcast %59 : vector<8x1xf32> to vector<8x126xf32>
    %78 = arith.cmpf oeq, %35, %77 : vector<8x126xf32>
    %cst_30 = arith.constant 0.000000e+00 : f32
    %79 = vector.broadcast %cst_30 : f32 to vector<8x126xf32>
    %80 = arith.select %78, %30, %79 : vector<8x126xi1>, vector<8x126xf32>
    %cst_31 = arith.constant dense<0.000000e+00> : vector<8xf32>
    %81 = vector.multi_reduction <add>, %80, %cst_31 [1] : vector<8x126xf32> to vector<8xf32>
    %82 = vector.shape_cast %81 : vector<8xf32> to vector<8x1xf32>
    %83 = vector.broadcast %59 : vector<8x1xf32> to vector<8x126xf32>
    %84 = arith.cmpf oge, %35, %83 : vector<8x126xf32>
    %cst_32 = arith.constant 1.000000e+00 : f32
    %85 = vector.broadcast %cst_32 : f32 to vector<8x1xf32>
    %86 = arith.subf %70, %85 : vector<8x1xf32>
    %87 = vector.broadcast %86 : vector<8x1xf32> to vector<8x126xf32>
    %88 = arith.cmpf ole, %35, %87 : vector<8x126xf32>
    %89 = arith.andi %84, %88 : vector<8x126xi1>
    %cst_33 = arith.constant 0.000000e+00 : f32
    %90 = vector.broadcast %cst_33 : f32 to vector<8x126xf32>
    %91 = arith.select %89, %30, %90 : vector<8x126xi1>, vector<8x126xf32>
    %cst_34 = arith.constant dense<0.000000e+00> : vector<8xf32>
    %92 = vector.multi_reduction <add>, %91, %cst_34 [1] : vector<8x126xf32> to vector<8xf32>
    %93 = vector.shape_cast %92 : vector<8xf32> to vector<8x1xf32>
    %94 = vector.broadcast %59 : vector<8x1xf32> to vector<8x126xf32>
    %95 = arith.cmpf oeq, %35, %94 : vector<8x126xf32>
    %cst_35 = arith.constant 0.000000e+00 : f32
    %96 = vector.broadcast %cst_35 : f32 to vector<8x126xf32>
    %97 = arith.select %95, %30, %96 : vector<8x126xi1>, vector<8x126xf32>
    %cst_36 = arith.constant dense<0.000000e+00> : vector<8xf32>
    %98 = vector.multi_reduction <add>, %97, %cst_36 [1] : vector<8x126xf32> to vector<8xf32>
    %99 = vector.shape_cast %98 : vector<8xf32> to vector<8x1xf32>
    %cst_37 = arith.constant 1.000000e+00 : f32
    %100 = vector.broadcast %cst_37 : f32 to vector<8x1xf32>
    %101 = arith.subf %70, %100 : vector<8x1xf32>
    %102 = vector.broadcast %101 : vector<8x1xf32> to vector<8x126xf32>
    %103 = arith.cmpf oeq, %35, %102 : vector<8x126xf32>
    %cst_38 = arith.constant 0.000000e+00 : f32
    %104 = vector.broadcast %cst_38 : f32 to vector<8x126xf32>
    %105 = arith.select %103, %30, %104 : vector<8x126xi1>, vector<8x126xf32>
    %cst_39 = arith.constant dense<0.000000e+00> : vector<8xf32>
    %106 = vector.multi_reduction <add>, %105, %cst_39 [1] : vector<8x126xf32> to vector<8xf32>
    %107 = vector.shape_cast %106 : vector<8xf32> to vector<8x1xf32>
    %108 = arith.addf %99, %107 : vector<8x1xf32>
    %cst_40 = arith.constant 5.000000e-01 : f32
    %109 = vector.broadcast %cst_40 : f32 to vector<8x1xf32>
    %110 = arith.mulf %109, %108 : vector<8x1xf32>
    %111 = arith.subf %93, %110 : vector<8x1xf32>
    %cst_41 = arith.constant 0.0333333351 : f32
    %112 = vector.broadcast %cst_41 : f32 to vector<8x1xf32>
    %113 = arith.mulf %112, %111 : vector<8x1xf32>
    %114 = arith.subf %70, %59 : vector<8x1xf32>
    %cst_42 = arith.constant 2.000000e+00 : f32
    %115 = vector.broadcast %cst_42 : f32 to vector<8x1xf32>
    %116 = arith.cmpf oge, %114, %115 : vector<8x1xf32>
    %cst_43 = arith.constant 0.000000e+00 : f32
    %117 = vector.broadcast %cst_43 : f32 to vector<8x1xf32>
    %118 = arith.select %116, %113, %117 : vector<8x1xi1>, vector<8x1xf32>
    %119 = vector.broadcast %55 : vector<8x1xf32> to vector<8x126xf32>
    %120 = arith.cmpf oge, %35, %119 : vector<8x126xf32>
    %cst_44 = arith.constant 1.000000e+00 : f32
    %121 = vector.broadcast %cst_44 : f32 to vector<8x1xf32>
    %122 = arith.subf %66, %121 : vector<8x1xf32>
    %123 = vector.broadcast %122 : vector<8x1xf32> to vector<8x126xf32>
    %124 = arith.cmpf ole, %35, %123 : vector<8x126xf32>
    %125 = arith.andi %120, %124 : vector<8x126xi1>
    %cst_45 = arith.constant 0.000000e+00 : f32
    %126 = vector.broadcast %cst_45 : f32 to vector<8x126xf32>
    %127 = arith.select %125, %30, %126 : vector<8x126xi1>, vector<8x126xf32>
    %cst_46 = arith.constant dense<0.000000e+00> : vector<8xf32>
    %128 = vector.multi_reduction <add>, %127, %cst_46 [1] : vector<8x126xf32> to vector<8xf32>
    %129 = vector.shape_cast %128 : vector<8xf32> to vector<8x1xf32>
    %130 = vector.broadcast %55 : vector<8x1xf32> to vector<8x126xf32>
    %131 = arith.cmpf oeq, %35, %130 : vector<8x126xf32>
    %cst_47 = arith.constant 0.000000e+00 : f32
    %132 = vector.broadcast %cst_47 : f32 to vector<8x126xf32>
    %133 = arith.select %131, %30, %132 : vector<8x126xi1>, vector<8x126xf32>
    %cst_48 = arith.constant dense<0.000000e+00> : vector<8xf32>
    %134 = vector.multi_reduction <add>, %133, %cst_48 [1] : vector<8x126xf32> to vector<8xf32>
    %135 = vector.shape_cast %134 : vector<8xf32> to vector<8x1xf32>
    %cst_49 = arith.constant 1.000000e+00 : f32
    %136 = vector.broadcast %cst_49 : f32 to vector<8x1xf32>
    %137 = arith.subf %66, %136 : vector<8x1xf32>
    %138 = vector.broadcast %137 : vector<8x1xf32> to vector<8x126xf32>
    %139 = arith.cmpf oeq, %35, %138 : vector<8x126xf32>
    %cst_50 = arith.constant 0.000000e+00 : f32
    %140 = vector.broadcast %cst_50 : f32 to vector<8x126xf32>
    %141 = arith.select %139, %30, %140 : vector<8x126xi1>, vector<8x126xf32>
    %cst_51 = arith.constant dense<0.000000e+00> : vector<8xf32>
    %142 = vector.multi_reduction <add>, %141, %cst_51 [1] : vector<8x126xf32> to vector<8xf32>
    %143 = vector.shape_cast %142 : vector<8xf32> to vector<8x1xf32>
    %144 = arith.addf %135, %143 : vector<8x1xf32>
    %cst_52 = arith.constant 5.000000e-01 : f32
    %145 = vector.broadcast %cst_52 : f32 to vector<8x1xf32>
    %146 = arith.mulf %145, %144 : vector<8x1xf32>
    %147 = arith.subf %129, %146 : vector<8x1xf32>
    %cst_53 = arith.constant 0.0333333351 : f32
    %148 = vector.broadcast %cst_53 : f32 to vector<8x1xf32>
    %149 = arith.mulf %148, %147 : vector<8x1xf32>
    %150 = arith.subf %66, %55 : vector<8x1xf32>
    %cst_54 = arith.constant 2.000000e+00 : f32
    %151 = vector.broadcast %cst_54 : f32 to vector<8x1xf32>
    %152 = arith.cmpf oge, %150, %151 : vector<8x1xf32>
    %cst_55 = arith.constant 0.000000e+00 : f32
    %153 = vector.broadcast %cst_55 : f32 to vector<8x1xf32>
    %154 = arith.select %152, %149, %153 : vector<8x1xi1>, vector<8x1xf32>
    %155 = arith.subf %76, %82 : vector<8x1xf32>
    %156 = vector.broadcast %59 : vector<8x1xf32> to vector<8x126xf32>
    %157 = arith.cmpf oge, %35, %156 : vector<8x126xf32>
    %cst_56 = arith.constant 1.000000e+00 : f32
    %158 = vector.broadcast %cst_56 : f32 to vector<8x1xf32>
    %159 = arith.subf %55, %158 : vector<8x1xf32>
    %160 = vector.broadcast %159 : vector<8x1xf32> to vector<8x126xf32>
    %161 = arith.cmpf ole, %35, %160 : vector<8x126xf32>
    %162 = arith.andi %157, %161 : vector<8x126xi1>
    %cst_57 = arith.constant 0.000000e+00 : f32
    %163 = vector.broadcast %cst_57 : f32 to vector<8x126xf32>
    %164 = arith.select %162, %30, %163 : vector<8x126xi1>, vector<8x126xf32>
    %cst_58 = arith.constant dense<0.000000e+00> : vector<8xf32>
    %165 = vector.multi_reduction <add>, %164, %cst_58 [1] : vector<8x126xf32> to vector<8xf32>
    %166 = vector.shape_cast %165 : vector<8xf32> to vector<8x1xf32>
    %167 = vector.broadcast %59 : vector<8x1xf32> to vector<8x126xf32>
    %168 = arith.cmpf oeq, %35, %167 : vector<8x126xf32>
    %cst_59 = arith.constant 0.000000e+00 : f32
    %169 = vector.broadcast %cst_59 : f32 to vector<8x126xf32>
    %170 = arith.select %168, %30, %169 : vector<8x126xi1>, vector<8x126xf32>
    %cst_60 = arith.constant dense<0.000000e+00> : vector<8xf32>
    %171 = vector.multi_reduction <add>, %170, %cst_60 [1] : vector<8x126xf32> to vector<8xf32>
    %172 = vector.shape_cast %171 : vector<8xf32> to vector<8x1xf32>
    %cst_61 = arith.constant 1.000000e+00 : f32
    %173 = vector.broadcast %cst_61 : f32 to vector<8x1xf32>
    %174 = arith.subf %55, %173 : vector<8x1xf32>
    %175 = vector.broadcast %174 : vector<8x1xf32> to vector<8x126xf32>
    %176 = arith.cmpf oeq, %35, %175 : vector<8x126xf32>
    %cst_62 = arith.constant 0.000000e+00 : f32
    %177 = vector.broadcast %cst_62 : f32 to vector<8x126xf32>
    %178 = arith.select %176, %30, %177 : vector<8x126xi1>, vector<8x126xf32>
    %cst_63 = arith.constant dense<0.000000e+00> : vector<8xf32>
    %179 = vector.multi_reduction <add>, %178, %cst_63 [1] : vector<8x126xf32> to vector<8xf32>
    %180 = vector.shape_cast %179 : vector<8xf32> to vector<8x1xf32>
    %181 = arith.addf %172, %180 : vector<8x1xf32>
    %cst_64 = arith.constant 5.000000e-01 : f32
    %182 = vector.broadcast %cst_64 : f32 to vector<8x1xf32>
    %183 = arith.mulf %182, %181 : vector<8x1xf32>
    %184 = arith.subf %166, %183 : vector<8x1xf32>
    %cst_65 = arith.constant 0.0333333351 : f32
    %185 = vector.broadcast %cst_65 : f32 to vector<8x1xf32>
    %186 = arith.mulf %185, %184 : vector<8x1xf32>
    %187 = arith.subf %55, %59 : vector<8x1xf32>
    %cst_66 = arith.constant 2.000000e+00 : f32
    %188 = vector.broadcast %cst_66 : f32 to vector<8x1xf32>
    %189 = arith.cmpf oge, %187, %188 : vector<8x1xf32>
    %cst_67 = arith.constant 0.000000e+00 : f32
    %190 = vector.broadcast %cst_67 : f32 to vector<8x1xf32>
    %191 = arith.select %189, %186, %190 : vector<8x1xi1>, vector<8x1xf32>
    %192 = arith.addf %155, %82 : vector<8x1xf32>
    %cst_68 = arith.constant 5.000000e-01 : f32
    %193 = vector.broadcast %cst_68 : f32 to vector<8x1xf32>
    %194 = arith.mulf %193, %192 : vector<8x1xf32>
    %195 = vector.broadcast %59 : vector<8x1xf32> to vector<8x126xf32>
    %196 = arith.cmpf oge, %35, %195 : vector<8x126xf32>
    %197 = vector.broadcast %55 : vector<8x1xf32> to vector<8x126xf32>
    %198 = arith.cmpf olt, %35, %197 : vector<8x126xf32>
    %199 = arith.andi %196, %198 : vector<8x126xi1>
    %200 = vector.broadcast %194 : vector<8x1xf32> to vector<8x126xf32>
    %201 = arith.cmpf oge, %30, %200 : vector<8x126xf32>
    %202 = arith.andi %199, %201 : vector<8x126xi1>
    %cst_69 = arith.constant 1.280000e+02 : f32
    %203 = vector.broadcast %cst_69 : f32 to vector<8x126xf32>
    %204 = arith.select %202, %35, %203 : vector<8x126xi1>, vector<8x126xf32>
    %cst_70 = arith.constant dense<0x7F800000> : vector<8xf32>
    %205 = vector.multi_reduction <minimumf>, %204, %cst_70 [1] : vector<8x126xf32> to vector<8xf32>
    %206 = vector.shape_cast %205 : vector<8xf32> to vector<8x1xf32>
    %cst_71 = arith.constant 1.280000e+02 : f32
    %207 = vector.broadcast %cst_71 : f32 to vector<8x1xf32>
    %208 = arith.cmpf oeq, %206, %207 : vector<8x1xf32>
    %209 = arith.select %208, %59, %206 : vector<8x1xi1>, vector<8x1xf32>
    %210 = vector.broadcast %59 : vector<8x1xf32> to vector<8x126xf32>
    %211 = arith.cmpf ogt, %35, %210 : vector<8x126xf32>
    %212 = vector.broadcast %55 : vector<8x1xf32> to vector<8x126xf32>
    %213 = arith.cmpf ole, %35, %212 : vector<8x126xf32>
    %214 = arith.andi %211, %213 : vector<8x126xi1>
    %215 = vector.broadcast %194 : vector<8x1xf32> to vector<8x126xf32>
    %216 = arith.cmpf oge, %30, %215 : vector<8x126xf32>
    %217 = arith.andi %214, %216 : vector<8x126xi1>
    %cst_72 = arith.constant -1.000000e+00 : f32
    %218 = vector.broadcast %cst_72 : f32 to vector<8x126xf32>
    %219 = arith.select %217, %35, %218 : vector<8x126xi1>, vector<8x126xf32>
    %cst_73 = arith.constant dense<0xFF800000> : vector<8xf32>
    %220 = vector.multi_reduction <maximumf>, %219, %cst_73 [1] : vector<8x126xf32> to vector<8xf32>
    %221 = vector.shape_cast %220 : vector<8xf32> to vector<8x1xf32>
    %cst_74 = arith.constant -1.000000e+00 : f32
    %222 = vector.broadcast %cst_74 : f32 to vector<8x1xf32>
    %223 = arith.cmpf oeq, %221, %222 : vector<8x1xf32>
    %224 = arith.select %223, %55, %221 : vector<8x1xi1>, vector<8x1xf32>
    %225 = arith.subf %224, %209 : vector<8x1xf32>
    %cst_75 = arith.constant 0.0333333351 : f32
    %226 = vector.broadcast %cst_75 : f32 to vector<8x1xf32>
    %227 = arith.mulf %225, %226 : vector<8x1xf32>
    %cst_76 = arith.constant 1.000000e+00 : f32
    %228 = vector.broadcast %cst_76 : f32 to vector<8x1xf32>
    %229 = arith.cmpf oge, %46, %228 : vector<8x1xf32>
    %cst_77 = arith.constant 2.000000e+00 : f32
    %230 = vector.broadcast %cst_77 : f32 to vector<8x1xf32>
    %231 = arith.cmpf oge, %51, %230 : vector<8x1xf32>
    %232 = arith.andi %229, %231 : vector<8x1xi1>
    %233 = arith.subf %2, %4 : vector<8x1xf32>
    %cst_78 = arith.constant 0.000000e+00 : f32
    %234 = vector.broadcast %cst_78 : f32 to vector<8x1xf32>
    %235 = arith.select %232, %118, %234 : vector<8x1xi1>, vector<8x1xf32>
    %cst_79 = arith.constant 0.000000e+00 : f32
    %236 = vector.broadcast %cst_79 : f32 to vector<8x1xf32>
    %237 = arith.select %232, %154, %236 : vector<8x1xi1>, vector<8x1xf32>
    %cst_80 = arith.constant 0.000000e+00 : f32
    %238 = vector.broadcast %cst_80 : f32 to vector<8x1xf32>
    %239 = arith.select %232, %155, %238 : vector<8x1xi1>, vector<8x1xf32>
    %cst_81 = arith.constant 0.000000e+00 : f32
    %240 = vector.broadcast %cst_81 : f32 to vector<8x1xf32>
    %241 = arith.select %232, %191, %240 : vector<8x1xi1>, vector<8x1xf32>
    %cst_82 = arith.constant 0.000000e+00 : f32
    %242 = vector.broadcast %cst_82 : f32 to vector<8x1xf32>
    %243 = arith.select %232, %227, %242 : vector<8x1xi1>, vector<8x1xf32>
    %244 = tpu.concatenate %2, %233, %15, %16, %28, %235, %237, %239, %241, %243 in 1 : vector<8x1xf32>, vector<8x1xf32>, vector<8x1xf32>, vector<8x1xf32>, vector<8x1xf32>, vector<8x1xf32>, vector<8x1xf32>, vector<8x1xf32>, vector<8x1xf32>, vector<8x1xf32> -> vector<8x10xf32>
    %c0_83 = arith.constant 0 : index
    %c0_84 = arith.constant 0 : index
    %245 = vector.load %arg4[%c0_83, %c0_84] : memref<8x10xf32, #tpu.memory_space<vmem>>, vector<8x10xf32>
    tpu.vector_store %arg4[%c0_83, %c0_84], %244 {strides = array<i32>} : memref<8x10xf32, #tpu.memory_space<vmem>>, vector<8x10xf32>,
    return
  }
  func.func @transform_0(%arg0: i32) -> (i32, i32) {
    %c0_i32 = arith.constant 0 : i32
    %c0_i32_0 = arith.constant 0 : i32
    return %arg0, %c0_i32 : i32, i32
  }
  func.func @transform_1(%arg0: i32) -> (i32, i32) {
    %c0_i32 = arith.constant 0 : i32
    %c0_i32_0 = arith.constant 0 : i32
    %c0_i32_1 = arith.constant 0 : i32
    return %c0_i32, %c0_i32_0 : i32, i32
  }
  func.func @transform_2(%arg0: i32) -> (i32, i32) {
    %c0_i32 = arith.constant 0 : i32
    %c0_i32_0 = arith.constant 0 : i32
    %c0_i32_1 = arith.constant 0 : i32
    return %c0_i32, %c0_i32_0 : i32, i32
  }
  func.func @transform_3(%arg0: i32) -> (i32, i32) {
    %c0_i32 = arith.constant 0 : i32
    %c0_i32_0 = arith.constant 0 : i32
    return %arg0, %c0_i32 : i32, i32
  }
}

</mosaic_0001>

<llo_original>
// kernel: feature_extractor.1
$region0: #{feature_extractor.1}
  #allocation0 [shape = 'u32[]', space=smem, size = 0x4, offset = 0x4, fixed_abs, tag = 'smem constant byte address 0x4 - core index']
  #allocation1 [shape = 'u32[144,128]{1,0:T(1,128)}', space=vmem, size = 0x12000, scoped, tag = 'internal scratch']
  %s0 = inlined_call_operand.hbm [shape: f32[16,128], index: 0, kind: input, shape index: {}]
  %s1 = inlined_call_operand.hbm [shape: f32[128,128], index: 1, kind: input, shape index: {}]
  %s2 = inlined_call_operand.hbm [shape: f32[128,128], index: 2, kind: input, shape index: {}]
  %s3 = inlined_call_operand.hbm [shape: f32[16,10], index: 3, kind: output, shape index: {}]
  %s4 = sld [smem:[#allocation0]]
  $region57: #{feature_extractor.1} parent=0
    _
  %s6 = ssub.s32 1, %s4
  %s7 = scalar_select 0, %s6, %s4
  $region1: #{feature_extractor.1} parent=0
    #allocation2 [shape = 'u8[8192]{0}', space=vmem, size = 0x2000, scoped, tag = 'input window, operand 0']
    #allocation3 [shape = 's32[2]{0}', space=sflag, size = 0x8, scoped, tag = 'scoped memory for feature_extractor.1']
    #allocation4 [shape = 's32[2]{0}', space=sflag, size = 0x8, scoped, tag = 'scoped memory for feature_extractor.1']
    #allocation5 [shape = 'u8[65536]{0}', space=vmem, size = 0x10000, scoped, tag = 'input window, operand 1, single buffered']
    #allocation6 [shape = 's32[1]{0}', space=sflag, size = 0x4, scoped, tag = 'scoped memory for feature_extractor.1']
    #allocation7 [shape = 'u8[65536]{0}', space=vmem, size = 0x10000, scoped, tag = 'input window, operand 2, single buffered']
    #allocation8 [shape = 'u8[8192]{0}', space=vmem, size = 0x2000, scoped, tag = 'output window, operand 0']
    %8 = vsyncpa [#allocation3], 0
    %s9 = scalar_lea.sflag [#allocation3], 1
    %10 = vsyncpa %s9, 0
    %11 = vsyncpa [#allocation6], 0
    %12 = vsyncpa [#allocation4], 0
    %s13 = scalar_lea.sflag [#allocation4], 1
    %14 = vsyncpa %s13, 0
    loop: start=0, step=1, limit=4
    $region2: #{feature_extractor.1} parent=1 // loop_pre_header
      _
    $region3: #{feature_extractor.1} parent=1 // loop_header
      %s16 = sphi 0, %s20
      %p17 = scmp.ge.s32.totalorder %s16, 4
      %s26 = sphi 0, %s28
      %s29 = sphi 0, %s26
      %s30 = sphi 0, %s29
      %s46 = sphi 0, %s30
      %s50 = sphi 0, %s50
      %s52 = sphi 0, %s50
      %s53 = sphi 0, %s52
      %s67 = sphi 0, %s53
      %s71 = sphi 0, %s71
      %s73 = sphi 0, %s71
      %s74 = sphi 0, %s73
      %s88 = sphi 0, %s74
      %s94 = sphi 0, %s96
      %s97 = sphi 0, %s94
      %s98 = sphi 0, %s97
      %s114 = sphi 0, %s98
    $region4: #{feature_extractor.1} parent=1 // loop_header_branch
      %19 = sbr.rel (%p17) target = $region8
    $region5: #{feature_extractor.1} parent=1 // loop_body
      %s21 = ssub.s32 %s16, 1
      %s22 = ssub.s32 %s16, 2
      %s23 = sadd.s32 %s16, 1
      %s24 = ssub.s32 %s16, %s23
      %p25 = scmp.eq.s32.totalorder %s24, 0
      %s27 = sadd.s32 %s26, 1
      %s28 = scalar_select %p25, %s26, %s27
      %p31 = pneg %p25
      %p32 = scmp.eq.s32.totalorder %s16, 1
      %p33 = por %p31, %p32
      %p34 = scmp.ne.s32.totalorder %s26, %s29
      %p35 = scmp.eq.s32.totalorder %s16, 0
      %p36 = por %p34, %p35
      %p37 = scmp.ne.s32.totalorder %s26, %s29
      %p38 = scmp.eq.s32.totalorder %s21, 1
      %p39 = por %p37, %p38
      %p40 = scmp.ne.s32.totalorder %s29, %s30
      %p41 = scmp.eq.s32.totalorder %s21, 0
      %p42 = por %p40, %p41
      %p43 = scmp.ne.s32.totalorder %s29, %s30
      %p44 = scmp.eq.s32.totalorder %s22, 1
      %p45 = por %p43, %p44
      %p47 = scmp.ne.s32.totalorder %s30, %s46
      %p48 = scmp.eq.s32.totalorder %s22, 0
      %p49 = por %p47, %p48
      %s51 = sadd.s32 %s50, 1
      %p54 = scmp.eq.s32.totalorder %s16, 1
      %p55 = scmp.ne.s32.totalorder %s50, %s52
      %p56 = scmp.eq.s32.totalorder %s16, 0
      %p57 = por %p55, %p56
      %p58 = scmp.ne.s32.totalorder %s50, %s52
      %p59 = scmp.eq.s32.totalorder %s21, 1
      %p60 = por %p58, %p59
      %p61 = scmp.ne.s32.totalorder %s52, %s53
      %p62 = scmp.eq.s32.totalorder %s21, 0
      %p63 = por %p61, %p62
      %p64 = scmp.ne.s32.totalorder %s52, %s53
      %p65 = scmp.eq.s32.totalorder %s22, 1
      %p66 = por %p64, %p65
      %p68 = scmp.ne.s32.totalorder %s53, %s67
      %p69 = scmp.eq.s32.totalorder %s22, 0
      %p70 = por %p68, %p69
      %s72 = sadd.s32 %s71, 1
      %p75 = scmp.eq.s32.totalorder %s16, 1
      %p76 = scmp.ne.s32.totalorder %s71, %s73
      %p77 = scmp.eq.s32.totalorder %s16, 0
      %p78 = por %p76, %p77
      %p79 = scmp.ne.s32.totalorder %s71, %s73
      %p80 = scmp.eq.s32.totalorder %s21, 1
      %p81 = por %p79, %p80
      %p82 = scmp.ne.s32.totalorder %s73, %s74
      %p83 = scmp.eq.s32.totalorder %s21, 0
      %p84 = por %p82, %p83
      %p85 = scmp.ne.s32.totalorder %s73, %s74
      %p86 = scmp.eq.s32.totalorder %s22, 1
      %p87 = por %p85, %p86
      %p89 = scmp.ne.s32.totalorder %s74, %s88
      %p90 = scmp.eq.s32.totalorder %s22, 0
      %p91 = por %p89, %p90
      %s92 = ssub.s32 %s16, %s23
      %p93 = scmp.eq.s32.totalorder %s92, 0
      %s95 = sadd.s32 %s94, 1
      %s96 = scalar_select %p93, %s94, %s95
      %p99 = pneg %p93
      %p100 = scmp.eq.s32.totalorder %s16, 1
      %p101 = por %p99, %p100
      %p102 = scmp.ne.s32.totalorder %s94, %s97
      %p103 = scmp.eq.s32.totalorder %s16, 0
      %p104 = por %p102, %p103
      %p105 = scmp.ne.s32.totalorder %s94, %s97
      %p106 = scmp.eq.s32.totalorder %s21, 1
      %p107 = por %p105, %p106
      %p108 = scmp.ne.s32.totalorder %s97, %s98
      %p109 = scmp.eq.s32.totalorder %s21, 0
      %p110 = por %p108, %p109
      %p111 = scmp.ne.s32.totalorder %s97, %s98
      %p112 = scmp.eq.s32.totalorder %s22, 1
      %p113 = por %p111, %p112
      %p115 = scmp.ne.s32.totalorder %s98, %s114
      %p116 = scmp.eq.s32.totalorder %s22, 0
      %p117 = por %p115, %p116
      %p118 = scmp.le.s32.totalorder 1, %s16
      %p119 = scmp.lt.s32.totalorder %s16, 3
      %p120 = pnand %p118, %p119
      %p121 = pneg %p120
      // Predicated region
      $region9: #{feature_extractor.1} parent=5 // pred_check
        _
      $region10: #{feature_extractor.1} parent=5 // pred_check_branch
        %123 = sbr.rel (%p120) target = $region12
      $region11: #{feature_extractor.1} parent=5 // pred_region
        %s124 = ssub.s32 %s16, 1
        // Predicated region
        $region13: #{feature_extractor.1} parent=11 // pred_check
          %p125 = pneg %p63
        $region14: #{feature_extractor.1} parent=11 // pred_check_branch
          %127 = sbr.rel (%p125) target = $region16
        $region15: #{feature_extractor.1} parent=11 // pred_region
          %s129 = ssub.s32 2048, 2048
          %130 = vsyncadd [#allocation6], %s129
          %s131 = sshll.u32 [#allocation5], 4
          %s132 = int_to_ptr.vmem [resolvable:$true] %s131
          %137 = dma.hbm_to_vmem [thread:$0]  %s1, 2048, %s132, [#allocation6], 128, 128, 8
        $region16: #{feature_extractor.1} parent=11 // pred_fallthru
          _
        // Predicated region
        $region17: #{feature_extractor.1} parent=11 // pred_check
          %p138 = pneg %p84
        $region18: #{feature_extractor.1} parent=11 // pred_check_branch
          %140 = sbr.rel (%p138) target = $region20
        $region19: #{feature_extractor.1} parent=11 // pred_region
          %s142 = ssub.s32 2048, 2048
          %143 = vsyncadd [#allocation6], %s142
          %s144 = sshll.u32 [#allocation7], 4
          %s145 = int_to_ptr.vmem [resolvable:$true] %s144
          %150 = dma.hbm_to_vmem [thread:$0]  %s2, 2048, %s145, [#allocation6], 128, 128, 8
        $region20: #{feature_extractor.1} parent=11 // pred_fallthru
          _
      $region12: #{feature_extractor.1} parent=5 // pred_fallthru
        _
      %p151 = scmp.lt.s32.totalorder %s16, 2
      // Predicated region
      $region21: #{feature_extractor.1} parent=5 // pred_check
        %p152 = pneg %p151
      $region22: #{feature_extractor.1} parent=5 // pred_check_branch
        %154 = sbr.rel (%p152) target = $region24
      $region23: #{feature_extractor.1} parent=5 // pred_region
        // Predicated region
        $region25: #{feature_extractor.1} parent=23 // pred_check
          %p155 = pneg %p36
        $region26: #{feature_extractor.1} parent=23 // pred_check_branch
          %157 = sbr.rel (%p155) target = $region28
        $region27: #{feature_extractor.1} parent=23 // pred_region
          %s158 = sand.u32 %s26, 1
          %s159 = scalar_lea.sflag [#allocation3], %s158
          %s160 = sand.u32 %s26, 1
          %s161 = smul.addr %s160, 8
          %s162 = scalar_lea.vmem [#allocation2], %s161
          %s164 = ssub.s32 128, 128
          %165 = vsyncadd %s159, %s164
          %s166 = smul.addr %s16, 128
          %s167 = scalar_lea.hbm %s0, %s166
          %s169 = sshll.u32 %s162, 4
          %s170 = int_to_ptr.vmem [resolvable:$true] %s169
          %172 = dma.hbm_to_vmem [thread:$0]  %s167, 128, %s170, %s159
        $region28: #{feature_extractor.1} parent=23 // pred_fallthru
          _
      $region24: #{feature_extractor.1} parent=5 // pred_fallthru
        _
      %p173 = scmp.le.s32.totalorder 1, %s16
      %p174 = scmp.lt.s32.totalorder %s16, 3
      %p175 = pnand %p173, %p174
      %p176 = pneg %p175
      // Predicated region
      $region29: #{feature_extractor.1} parent=5 // pred_check
        _
      $region30: #{feature_extractor.1} parent=5 // pred_check_branch
        %178 = sbr.rel (%p175) target = $region32
      $region31: #{feature_extractor.1} parent=5 // pred_region
        %s179 = ssub.s32 %s16, 1
        %s180 = sand.u32 %s29, 1
        %s181 = scalar_lea.sflag [#allocation3], %s180
        %s182 = sand.u32 %s29, 1
        %s183 = smul.addr %s182, 8
        %s184 = scalar_lea.vmem [#allocation2], %s183
        // Predicated region
        $region33: #{feature_extractor.1} parent=31 // pred_check
          %p185 = pneg %p42
        $region34: #{feature_extractor.1} parent=31 // pred_check_branch
          %187 = sbr.rel (%p185) target = $region36
        $region35: #{feature_extractor.1} parent=31 // pred_region
          %188 = dma.done %s181, 128
        $region36: #{feature_extractor.1} parent=31 // pred_fallthru
          _
        // Predicated region
        $region37: #{feature_extractor.1} parent=31 // pred_check
          %p189 = pneg %p63
        $region38: #{feature_extractor.1} parent=31 // pred_check_branch
          %191 = sbr.rel (%p189) target = $region40
        $region39: #{feature_extractor.1} parent=31 // pred_region
          %192 = dma.done [#allocation6], 2048
        $region40: #{feature_extractor.1} parent=31 // pred_fallthru
          _
        // Predicated region
        $region41: #{feature_extractor.1} parent=31 // pred_check
          %p193 = pneg %p84
        $region42: #{feature_extractor.1} parent=31 // pred_check_branch
          %195 = sbr.rel (%p193) target = $region44
        $region43: #{feature_extractor.1} parent=31 // pred_region
          %196 = dma.done [#allocation6], 2048
        $region44: #{feature_extractor.1} parent=31 // pred_fallthru
          _
        %s197 = sand.u32 %s29, 1
        %s198 = scalar_lea.sflag [#allocation3], %s197
        %s199 = sand.u32 %s29, 1
        %s200 = smul.addr %s199, 8
        %s201 = scalar_lea.vmem [#allocation2], %s200
        %p202 = pneg %p42
        %p203 = pneg %p39
        %p204 = pneg %p63
        %p205 = pneg %p60
        %p206 = pneg %p84
        %p207 = pneg %p81
        %p208 = pneg %p110
        %p209 = pneg %p107
        %s210 = sand.u32 %s97, 1
        %s211 = scalar_lea.sflag [#allocation4], %s210
        %s212 = sand.u32 %s97, 1
        %s213 = smul.addr %s212, 8
        %s214 = scalar_lea.vmem [#allocation8], %s213
        %v215 = vld [vmem:[%s184] sm:$0xff]
        %216 = vmax.xlane.f32.xlu0 %v215
        %v217 = vpop.xlane.xlu0 %216
        %218 = vmin.xlane.f32.xlu0 %v215
        %v219 = vpop.xlane.xlu0 %218
        %220 = vadd.xlane.f32.xlu0 %v215
        %v221 = vpop.xlane.xlu0 %220
        %v222 = vmul.f32 %v221, 0.0078125
        %v223 = vsub.f32 %v215, %v222
        %v224 = vmul.f32 %v223, %v223
        %225 = vadd.xlane.f32.xlu0 %v224
        %v226 = vpop.xlane.xlu0 %225
        %v227 = vmul.f32 %v226, 0.007874016
        %v228 = vrsqrt.pop %v227
        %v229 = vmul.f32 %v227, %v228
        %vm230 = vcmp.eq.f32.partialorder %v227, inf
        %v231 = vsel %vm230, %v227, %v229
        %vm232 = vcmp.eq.f32.partialorder %v227, 0.0
        %v233 = vand.u32 %v227, 2147483648
        %v234 = vsel %vm232, %v233, %v231
        %v235 = vld [vmem:[#allocation5] sm:$0xff]
        %v236 = vld [vmem:[#allocation5 + $0x8] sm:$0xff]
        %v237 = vld [vmem:[#allocation5 + $0x10] sm:$0xff]
        %v238 = vld [vmem:[#allocation5 + $0x18] sm:$0xff]
        %v239 = vld [vmem:[#allocation5 + $0x20] sm:$0xff]
        %v240 = vld [vmem:[#allocation5 + $0x28] sm:$0xff]
        %v241 = vld [vmem:[#allocation5 + $0x30] sm:$0xff]
        %v242 = vld [vmem:[#allocation5 + $0x38] sm:$0xff]
        %v243 = vld [vmem:[#allocation5 + $0x40] sm:$0xff]
        %v244 = vld [vmem:[#allocation5 + $0x48] sm:$0xff]
        %v245 = vld [vmem:[#allocation5 + $0x50] sm:$0xff]
        %v246 = vld [vmem:[#allocation5 + $0x58] sm:$0xff]
        %v247 = vld [vmem:[#allocation5 + $0x60] sm:$0xff]
        %v248 = vld [vmem:[#allocation5 + $0x68] sm:$0xff]
        %v249 = vld [vmem:[#allocation5 + $0x70] sm:$0xff]
        %v250 = vld [vmem:[#allocation5 + $0x78] sm:$0xff]
        %251 = vmatprep.subr.mxu0 0.0
        %252 = vmatpush1.msra.mxu0 %v235
        %253 = vmatprep.subr.mxu0 0.0
        %254 = vmatpush1.msra.mxu0 %v236
        %255 = vmatprep.subr.mxu0 0.0
        %256 = vmatpush1.msra.mxu0 %v237
        %257 = vmatprep.subr.mxu0 0.0
        %258 = vmatpush1.msra.mxu0 %v238
        %259 = vmatprep.subr.mxu0 0.0
        %260 = vmatpush1.msra.mxu0 %v239
        %261 = vmatprep.subr.mxu0 0.0
        %262 = vmatpush1.msra.mxu0 %v240
        %263 = vmatprep.subr.mxu0 0.0
        %264 = vmatpush1.msra.mxu0 %v241
        %265 = vmatprep.subr.mxu0 0.0
        %266 = vmatpush1.msra.mxu0 %v242
        %267 = vmatprep.subr.mxu0 0.0
        %268 = vmatpush1.msra.mxu0 %v243
        %269 = vmatprep.subr.mxu0 0.0
        %270 = vmatpush1.msra.mxu0 %v244
        %271 = vmatprep.subr.mxu0 0.0
        %272 = vmatpush1.msra.mxu0 %v245
        %273 = vmatprep.subr.mxu0 0.0
        %274 = vmatpush1.msra.mxu0 %v246
        %275 = vmatprep.subr.mxu0 0.0
        %276 = vmatpush1.msra.mxu0 %v247
        %277 = vmatprep.subr.mxu0 0.0
        %278 = vmatpush1.msra.mxu0 %v248
        %279 = vmatprep.subr.mxu0 0.0
        %280 = vmatpush1.msra.mxu0 %v249
        %281 = vmatprep.subr.mxu0 0.0
        %282 = vmatpush1.msra.mxu0 %v250
        %283 = vmatprep.subr.mxu0 0.0
        %284 = vmatpush1.msra.mxu0 0.0
        %285 = vmatprep.subr.mxu0 0.0
        %286 = vmatpush1.msra.mxu0 0.0
        %287 = vmatprep.subr.mxu0 0.0
        %288 = vmatpush1.msra.mxu0 0.0
        %289 = vmatprep.subr.mxu0 0.0
        %290 = vmatpush1.msra.mxu0 0.0
        %291 = vmatprep.subr.mxu0 0.0
        %292 = vmatpush1.msra.mxu0 0.0
        %293 = vmatprep.subr.mxu0 0.0
        %294 = vmatpush1.msra.mxu0 0.0
        %295 = vmatprep.subr.mxu0 0.0
        %296 = vmatpush1.msra.mxu0 0.0
        %297 = vmatprep.subr.mxu0 0.0
        %298 = vmatpush1.msra.mxu0 0.0
        %299 = vmatprep.subr.mxu0 0.0
        %300 = vmatpush1.msra.mxu0 0.0
        %301 = vmatprep.subr.mxu0 0.0
        %302 = vmatpush1.msra.mxu0 0.0
        %303 = vmatprep.subr.mxu0 0.0
        %304 = vmatpush1.msra.mxu0 0.0
        %305 = vmatprep.subr.mxu0 0.0
        %306 = vmatpush1.msra.mxu0 0.0
        %307 = vmatprep.subr.mxu0 0.0
        %308 = vmatpush1.msra.mxu0 0.0
        %309 = vmatprep.subr.mxu0 0.0
        %310 = vmatpush1.msra.mxu0 0.0
        %311 = vmatprep.subr.mxu0 0.0
        %312 = vmatpush1.msra.mxu0 0.0
        %313 = vmatprep.subr.mxu0 0.0
        %314 = vmatpush1.msra.mxu0 0.0
        %315 = vmatprep.mubr.f32.mxu0 0.0
        %316 = vmatmul.mubr.f32.gmra.mrb[0].mxu0 %v215
        %v317 = vpop.f32.mrb[0].mxu0
        %v318 = vadd.f32 0.0, %v317
        %v319 = vpop.f32.mrb[0].mxu0
        %320 = vdwg.mxu0
        %v321 = vld [vmem:[#allocation7] sm:$0xff]
        %v322 = vld [vmem:[#allocation7 + $0x8] sm:$0xff]
        %v323 = vld [vmem:[#allocation7 + $0x10] sm:$0xff]
        %v324 = vld [vmem:[#allocation7 + $0x18] sm:$0xff]
        %v325 = vld [vmem:[#allocation7 + $0x20] sm:$0xff]
        %v326 = vld [vmem:[#allocation7 + $0x28] sm:$0xff]
        %v327 = vld [vmem:[#allocation7 + $0x30] sm:$0xff]
        %v328 = vld [vmem:[#allocation7 + $0x38] sm:$0xff]
        %v329 = vld [vmem:[#allocation7 + $0x40] sm:$0xff]
        %v330 = vld [vmem:[#allocation7 + $0x48] sm:$0xff]
        %v331 = vld [vmem:[#allocation7 + $0x50] sm:$0xff]
        %v332 = vld [vmem:[#allocation7 + $0x58] sm:$0xff]
        %v333 = vld [vmem:[#allocation7 + $0x60] sm:$0xff]
        %v334 = vld [vmem:[#allocation7 + $0x68] sm:$0xff]
        %v335 = vld [vmem:[#allocation7 + $0x70] sm:$0xff]
        %v336 = vld [vmem:[#allocation7 + $0x78] sm:$0xff]
        %337 = vmatprep.subr.mxu0 0.0
        %338 = vmatpush1.msra.mxu0 %v321
        %339 = vmatprep.subr.mxu0 0.0
        %340 = vmatpush1.msra.mxu0 %v322
        %341 = vmatprep.subr.mxu0 0.0
        %342 = vmatpush1.msra.mxu0 %v323
        %343 = vmatprep.subr.mxu0 0.0
        %344 = vmatpush1.msra.mxu0 %v324
        %345 = vmatprep.subr.mxu0 0.0
        %346 = vmatpush1.msra.mxu0 %v325
        %347 = vmatprep.subr.mxu0 0.0
        %348 = vmatpush1.msra.mxu0 %v326
        %349 = vmatprep.subr.mxu0 0.0
        %350 = vmatpush1.msra.mxu0 %v327
        %351 = vmatprep.subr.mxu0 0.0
        %352 = vmatpush1.msra.mxu0 %v328
        %353 = vmatprep.subr.mxu0 0.0
        %354 = vmatpush1.msra.mxu0 %v329
        %355 = vmatprep.subr.mxu0 0.0
        %356 = vmatpush1.msra.mxu0 %v330
        %357 = vmatprep.subr.mxu0 0.0
        %358 = vmatpush1.msra.mxu0 %v331
        %359 = vmatprep.subr.mxu0 0.0
        %360 = vmatpush1.msra.mxu0 %v332
        %361 = vmatprep.subr.mxu0 0.0
        %362 = vmatpush1.msra.mxu0 %v333
        %363 = vmatprep.subr.mxu0 0.0
        %364 = vmatpush1.msra.mxu0 %v334
        %365 = vmatprep.subr.mxu0 0.0
        %366 = vmatpush1.msra.mxu0 %v335
        %367 = vmatprep.subr.mxu0 0.0
        %368 = vmatpush1.msra.mxu0 %v336
        %369 = vmatprep.subr.mxu0 0.0
        %370 = vmatpush1.msra.mxu0 0.0
        %371 = vmatprep.subr.mxu0 0.0
        %372 = vmatpush1.msra.mxu0 0.0
        %373 = vmatprep.subr.mxu0 0.0
        %374 = vmatpush1.msra.mxu0 0.0
        %375 = vmatprep.subr.mxu0 0.0
        %376 = vmatpush1.msra.mxu0 0.0
        %377 = vmatprep.subr.mxu0 0.0
        %378 = vmatpush1.msra.mxu0 0.0
        %379 = vmatprep.subr.mxu0 0.0
        %380 = vmatpush1.msra.mxu0 0.0
        %381 = vmatprep.subr.mxu0 0.0
        %382 = vmatpush1.msra.mxu0 0.0
        %383 = vmatprep.subr.mxu0 0.0
        %384 = vmatpush1.msra.mxu0 0.0
        %385 = vmatprep.subr.mxu0 0.0
        %386 = vmatpush1.msra.mxu0 0.0
        %387 = vmatprep.subr.mxu0 0.0
        %388 = vmatpush1.msra.mxu0 0.0
        %389 = vmatprep.subr.mxu0 0.0
        %390 = vmatpush1.msra.mxu0 0.0
        %391 = vmatprep.subr.mxu0 0.0
        %392 = vmatpush1.msra.mxu0 0.0
        %393 = vmatprep.subr.mxu0 0.0
        %394 = vmatpush1.msra.mxu0 0.0
        %395 = vmatprep.subr.mxu0 0.0
        %396 = vmatpush1.msra.mxu0 0.0
        %397 = vmatprep.subr.mxu0 0.0
        %398 = vmatpush1.msra.mxu0 0.0
        %399 = vmatprep.subr.mxu0 0.0
        %400 = vmatpush1.msra.mxu0 0.0
        %401 = vmatprep.mubr.f32.mxu0 0.0
        %402 = vmatmul.mubr.f32.gmra.mrb[0].mxu0 %v215
        %v403 = vpop.f32.mrb[0].mxu0
        %v404 = vadd.f32 0.0, %v403
        %v405 = vpop.f32.mrb[0].mxu0
        %406 = vdwg.mxu0
        %v407 = vmul.f32 %v318, %v318
        %v408 = vmul.f32 %v404, %v404
        %v409 = vadd.f32 %v407, %v408
        %v410 = vrsqrt.pop %v409
        %v411 = vmul.f32 %v409, %v410
        %vm412 = vcmp.eq.f32.partialorder %v409, inf
        %v413 = vsel %vm412, %v409, %v411
        %vm414 = vcmp.eq.f32.partialorder %v409, 0.0
        %v415 = vand.u32 %v409, 2147483648
        %v416 = vsel %vm414, %v415, %v413
        %417 = vadd.xlane.f32.xlu0 %v416
        %v418 = vpop.xlane.xlu0 %417
        %v419 = vmul.f32 %v418, 0.0078125
        %v420 = vlaneseq
        %v421 = vand.u32 %v420, 127
        %v422 = vadd.s32 %v421, 1
        %v423 = vcvt.s32.f32 %v422
        %425 = vrot.lane.b32.xlu0 %v215, 1
        %v426 = vpop.permute.xlu0 %425
        %vm428 = vcmp.gt.f32.partialorder %v215, %v426
        %429 = vrot.lane.b32.xlu0 %v215, 127
        %v430 = vpop.permute.xlu0 %429
        %vm432 = vcmp.gt.f32.partialorder %v215, %v430
        %vm433 = vmand %vm428, %vm432
        %vm434 = vcmp.lt.f32.partialorder %v215, %v426
        %vm435 = vcmp.lt.f32.partialorder %v215, %v430
        %vm436 = vmand %vm434, %vm435
        %v437 = vsel %vm433, 1.0, 0.0
        %439 = vrot.lane.b32.xlu0 %v437, 127
        %v440 = vpop.permute.xlu0 %439
        %vm442 = vcmask 1031168
        %v443 = vsel %vm442, %v440, 0.0
        %444 = vadd.xlane.f32.xlu0 %v443
        %v445 = vpop.xlane.xlu0 %444
        %v446 = vsel %vm436, 1.0, 0.0
        %448 = vrot.lane.b32.xlu0 %v446, 127
        %v449 = vpop.permute.xlu0 %448
        %v451 = vsel %vm442, %v449, 0.0
        %452 = vadd.xlane.f32.xlu0 %v451
        %v453 = vpop.xlane.xlu0 %452
        %455 = vrot.lane.b32.xlu0 %v423, 1
        %v456 = vpop.permute.xlu0 %455
        %v458 = vsel %vm433, %v456, 128.0
        %vm459 = vcmask 1039368
        %v460 = vsel %vm459, %v458, inf
        %461 = vmin.xlane.f32.xlu0 %v460
        %v462 = vpop.xlane.xlu0 %461
        %v463 = vsel %vm436, %v456, 128.0
        %v464 = vsel %vm459, %v463, inf
        %465 = vmin.xlane.f32.xlu0 %v464
        %v466 = vpop.xlane.xlu0 %465
        %vm467 = vcmp.gt.f32.partialorder %v423, %v466
        %v468 = vsel %vm467, 1, 0
        %469 = vrot.lane.b32.xlu0 %v468, 1
        %v470 = vpop.permute.xlu0 %469
        %vm471 = vcmp.ne.s32.totalorder %v470, 0
        %vm472 = vmand %vm436, %vm471
        %v473 = vsel %vm472, %v456, 128.0
        %v474 = vsel %vm459, %v473, inf
        %475 = vmin.xlane.f32.xlu0 %v474
        %v476 = vpop.xlane.xlu0 %475
        %v477 = vsel %vm436, %v456, -1.0
        %v478 = vsel %vm459, %v477, -inf
        %479 = vmax.xlane.f32.xlu0 %v478
        %v480 = vpop.xlane.xlu0 %479
        %vm481 = vcmp.eq.f32.partialorder %v423, %v462
        %v482 = vsel %vm481, %v430, 0.0
        %v483 = vsel %vm442, %v482, 0.0
        %484 = vadd.xlane.f32.xlu0 %v483
        %v485 = vpop.xlane.xlu0 %484
        %vm486 = vcmp.eq.f32.partialorder %v423, %v466
        %v487 = vsel %vm486, %v430, 0.0
        %v488 = vsel %vm442, %v487, 0.0
        %489 = vadd.xlane.f32.xlu0 %v488
        %v490 = vpop.xlane.xlu0 %489
        %vm491 = vcmp.ge.f32.partialorder %v423, %v466
        %v492 = vsub.f32 %v480, 1.0
        %vm493 = vcmp.le.f32.partialorder %v423, %v492
        %vm494 = vmand %vm491, %vm493
        %v495 = vsel %vm494, %v430, 0.0
        %v496 = vsel %vm442, %v495, 0.0
        %497 = vadd.xlane.f32.xlu0 %v496
        %v498 = vpop.xlane.xlu0 %497
        %vm499 = vcmp.eq.f32.partialorder %v423, %v492
        %v500 = vsel %vm499, %v430, 0.0
        %v501 = vsel %vm442, %v500, 0.0
        %502 = vadd.xlane.f32.xlu0 %v501
        %v503 = vpop.xlane.xlu0 %502
        %v504 = vadd.f32 %v490, %v503
        %v505 = vmul.f32 %v504, 0.5
        %v506 = vsub.f32 %v498, %v505
        %v507 = vmul.f32 %v506, 0.033333335
        %v508 = vsub.f32 %v480, %v466
        %vm509 = vcmp.ge.f32.partialorder %v508, 2.0
        %v510 = vsel %vm509, %v507, 0.0
        %vm511 = vcmp.ge.f32.partialorder %v423, %v462
        %v512 = vsub.f32 %v476, 1.0
        %vm513 = vcmp.le.f32.partialorder %v423, %v512
        %vm514 = vmand %vm511, %vm513
        %v515 = vsel %vm514, %v430, 0.0
        %v516 = vsel %vm442, %v515, 0.0
        %517 = vadd.xlane.f32.xlu0 %v516
        %v518 = vpop.xlane.xlu0 %517
        %vm519 = vcmp.eq.f32.partialorder %v423, %v512
        %v520 = vsel %vm519, %v430, 0.0
        %v521 = vsel %vm442, %v520, 0.0
        %522 = vadd.xlane.f32.xlu0 %v521
        %v523 = vpop.xlane.xlu0 %522
        %v524 = vadd.f32 %v485, %v523
        %v525 = vmul.f32 %v524, 0.5
        %v526 = vsub.f32 %v518, %v525
        %v527 = vmul.f32 %v526, 0.033333335
        %v528 = vsub.f32 %v476, %v462
        %vm529 = vcmp.ge.f32.partialorder %v528, 2.0
        %v530 = vsel %vm529, %v527, 0.0
        %v531 = vsub.f32 %v485, %v490
        %v532 = vsub.f32 %v462, 1.0
        %vm533 = vcmp.le.f32.partialorder %v423, %v532
        %vm534 = vmand %vm491, %vm533
        %v535 = vsel %vm534, %v430, 0.0
        %v536 = vsel %vm442, %v535, 0.0
        %537 = vadd.xlane.f32.xlu0 %v536
        %v538 = vpop.xlane.xlu0 %537
        %vm539 = vcmp.eq.f32.partialorder %v423, %v532
        %v540 = vsel %vm539, %v430, 0.0
        %v541 = vsel %vm442, %v540, 0.0
        %542 = vadd.xlane.f32.xlu0 %v541
        %v543 = vpop.xlane.xlu0 %542
        %v544 = vadd.f32 %v490, %v543
        %v545 = vmul.f32 %v544, 0.5
        %v546 = vsub.f32 %v538, %v545
        %v547 = vmul.f32 %v546, 0.033333335
        %v548 = vsub.f32 %v462, %v466
        %vm549 = vcmp.ge.f32.partialorder %v548, 2.0
        %v550 = vsel %vm549, %v547, 0.0
        %v551 = vadd.f32 %v531, %v490
        %v552 = vmul.f32 %v551, 0.5
        %vm553 = vcmp.lt.f32.partialorder %v423, %v462
        %vm554 = vmand %vm491, %vm553
        %vm555 = vcmp.ge.f32.partialorder %v215, %v552
        %v556 = vsel %vm555, 1, 0
        %557 = vrot.lane.b32.xlu0 %v556, 127
        %v558 = vpop.permute.xlu0 %557
        %vm559 = vcmp.ne.s32.totalorder %v558, 0
        %vm560 = vmand %vm554, %vm559
        %v561 = vsel %vm560, %v423, 128.0
        %v562 = vsel %vm442, %v561, inf
        %563 = vmin.xlane.f32.xlu0 %v562
        %v564 = vpop.xlane.xlu0 %563
        %vm565 = vcmp.eq.f32.partialorder %v564, 128.0
        %v566 = vsel %vm565, %v466, %v564
        %vm567 = vcmp.le.f32.partialorder %v423, %v462
        %vm568 = vmand %vm467, %vm567
        %vm569 = vmand %vm568, %vm559
        %v570 = vsel %vm569, %v423, -1.0
        %v571 = vsel %vm442, %v570, -inf
        %572 = vmax.xlane.f32.xlu0 %v571
        %v573 = vpop.xlane.xlu0 %572
        %vm574 = vcmp.eq.f32.partialorder %v573, -1.0
        %v575 = vsel %vm574, %v462, %v573
        %v576 = vsub.f32 %v575, %v566
        %v577 = vmul.f32 %v576, 0.033333335
        %vm578 = vcmp.ge.f32.partialorder %v445, 1.0
        %vm579 = vcmp.ge.f32.partialorder %v453, 2.0
        %vm580 = vmand %vm578, %vm579
        %v581 = vsub.f32 %v217, %v219
        %v582 = vsel %vm580, %v510, 0.0
        %v583 = vsel %vm580, %v530, 0.0
        %v584 = vsel %vm580, %v531, 0.0
        %v585 = vsel %vm580, %v550, 0.0
        %v586 = vsel %vm580, %v577, 0.0
        %vm587 = vcmask 7168
        %v588 = vsel %vm587, %v217, %v581
        %vm589 = vcmask 15360
        %v590 = vsel %vm589, %v588, %v227
        %vm591 = vcmask 23552
        %v592 = vsel %vm591, %v590, %v234
        %vm593 = vcmask 31744
        %v594 = vsel %vm593, %v592, %v419
        %vm595 = vcmask 39936
        %v596 = vsel %vm595, %v594, %v582
        %vm597 = vcmask 48128
        %v598 = vsel %vm597, %v596, %v583
        %vm599 = vcmask 56320
        %v600 = vsel %vm599, %v598, %v584
        %vm601 = vcmask 64512
        %v602 = vsel %vm601, %v600, %v585
        %vm603 = vcmask 72704
        %v604 = vsel %vm603, %v602, %v586
        %vm605 = vcmask 80896
        %606 = vst.msk [vmem:[%s214] sm:$0xff] %vm605, %v604
        %s607 = sand.u32 %s97, 1
        %s608 = scalar_lea.sflag [#allocation4], %s607
        %s609 = sand.u32 %s97, 1
        %s610 = smul.addr %s609, 8
        %s611 = scalar_lea.vmem [#allocation8], %s610
        // Predicated region
        $region45: #{feature_extractor.1} parent=31 // pred_check
          %p612 = pneg %p107
        $region46: #{feature_extractor.1} parent=31 // pred_check_branch
          %614 = sbr.rel (%p612) target = $region48
        $region47: #{feature_extractor.1} parent=31 // pred_region
          %s616 = ssub.s32 128, 128
          %617 = vsyncadd %s608, %s616
          %s618 = smul.addr %s21, 128
          %s619 = scalar_lea.hbm %s3, %s618
          %s621 = sshll.u32 %s611, 4
          %s622 = int_to_ptr.vmem [resolvable:$true] %s621
          %624 = dma.vmem_to_hbm [thread:$0]  %s622, 128, %s619, %s608
        $region48: #{feature_extractor.1} parent=31 // pred_fallthru
          _
      $region32: #{feature_extractor.1} parent=5 // pred_fallthru
        _
      %p625 = scmp.le.s32.totalorder 2, %s16
      // Predicated region
      $region49: #{feature_extractor.1} parent=5 // pred_check
        %p626 = pneg %p625
      $region50: #{feature_extractor.1} parent=5 // pred_check_branch
        %628 = sbr.rel (%p626) target = $region52
      $region51: #{feature_extractor.1} parent=5 // pred_region
        %s629 = ssub.s32 %s16, 2
        // Predicated region
        $region53: #{feature_extractor.1} parent=51 // pred_check
          %p630 = pneg %p113
        $region54: #{feature_extractor.1} parent=51 // pred_check_branch
          %632 = sbr.rel (%p630) target = $region56
        $region55: #{feature_extractor.1} parent=51 // pred_region
          %s633 = sand.u32 %s98, 1
          %s634 = scalar_lea.sflag [#allocation4], %s633
          %s635 = sand.u32 %s98, 1
          %s636 = smul.addr %s635, 8
          %s637 = scalar_lea.vmem [#allocation8], %s636
          %638 = dma.done %s634, 128
        $region56: #{feature_extractor.1} parent=51 // pred_fallthru
          _
      $region52: #{feature_extractor.1} parent=5 // pred_fallthru
        _
    $region6: #{feature_extractor.1} parent=1 // loop_footer
      %s20 = sadd.s32 1, %s16
    $region7: #{feature_extractor.1} parent=1 // loop_footer_branch
      %15 = sbr.rel target = $region3
    $region8: #{feature_extractor.1} parent=1 // loop_exit
      _
    %639 = vsyncpa [#allocation3], 1
    %s640 = scalar_lea.sflag [#allocation3], 1
    %641 = vsyncpa %s640, 1
    %642 = vsyncpa [#allocation6], 1
    %643 = vsyncpa [#allocation4], 1
    %s644 = scalar_lea.sflag [#allocation4], 1
    %645 = vsyncpa %s644, 1

</llo_original>
